<compile_context>
chip_gen: v7x
topology: tpu7x:2x2x1
jax: 0.10.0
libtpu: 0.0.40
codegen_flags: <defaults>
</compile_context>

<pallas_src>
import functools

import jax
import jax.numpy as jnp
from jax import lax
from jax.experimental import pallas as pl
from jax.experimental.pallas import tpu as pltpu

_K = 256        # kernel-2 cumsum block width (MXU-native lane dim on v6e/v7x)
_TR2 = 512      # kernel-2 rows (of K lanes) per grid chunk
_TR1 = 4096     # kernel-1 rows (of 128 lanes) per grid block (~7 MiB/step)


# ---------------------------------------------------------------------------
# Kernel 1: neg_err = sigmoid(x)*(2y-1) - 1  (= -error), label = y (bf16),
#           with the padded tail masked to (neg=+1, label=0).
# ---------------------------------------------------------------------------
def _errors_kernel(x_ref, y_ref, neg_ref, lab_ref, *, n_valid, block_rows):
    x = x_ref[...]
    y = y_ref[...].astype(jnp.float32)
    # global flat index of each element (to mask the padded tail in-kernel)
    base = pl.program_id(0) * (block_rows * 128)
    ridx = lax.broadcasted_iota(jnp.int32, x.shape, 0)
    lidx = lax.broadcasted_iota(jnp.int32, x.shape, 1)
    valid = (base + ridx * 128 + lidx) < n_valid
    # sigmoid(x) = 0.5*tanh(0.5*x) + 0.5 : tanh runs on the EUP slot, no divide
    s = 0.5 * jnp.tanh(0.5 * x) + 0.5
    neg = s * (2.0 * y - 1.0) - 1.0          # = -(1 - sigmoid(x) * sign) <= 0
    # padded tail: neg = +1 (> any real value -> sorts last), label 0 -> no loss
    neg_ref[...] = jnp.where(valid, neg, 1.0)
    lab_ref[...] = jnp.where(valid, y, 0.0).astype(jnp.bfloat16)


# ---------------------------------------------------------------------------
# Kernel 2: Lovasz gradient + relu-dot on the sorted vectors, chunked over rows
#           with a sequential SMEM positive-count carry and a loss accumulator.
# ---------------------------------------------------------------------------
def _lovasz_kernel(gts_ref, err_ref, gt_ref, tri_ref, stri_ref, out_ref,
                   carry_ref, acc_ref):
    c = pl.program_id(0)
    nc = pl.num_programs(0)
    TR, K = err_ref.shape

    @pl.when(c == 0)
    def _():
        carry_ref[0] = 0.0
        acc_ref[0] = 0.0

    gts = gts_ref[0]                  # total positive count (sort invariant)
    carry_in = carry_ref[0]           # positives in all previous chunks

    neg = err_ref[...]                # (TR,K) f32, negated sorted errors
    gt = gt_ref[...]                  # (TR,K) bf16, permuted 0/1 labels
    tri = tri_ref[...]                # (K,K) bf16 constant, tri[j,i] = (j <= i)
    stri = stri_ref[...]              # (TR,TR) bf16 constant, stri[r,j] = (j < r)

    # per-row inclusive cumsum of 0/1 labels: bf16 MXU matmul, exact counts
    crow = jnp.dot(gt, tri, preferred_element_type=jnp.float32)          # (TR,K)
    row_tot = crow[:, K - 1:K]                                           # (TR,1)
    # within-chunk exclusive prefix of row totals (tiny bf16 MXU matmul, exact)
    row_pre = jnp.dot(stri, row_tot.astype(jnp.bfloat16),
                      preferred_element_type=jnp.float32)                # (TR,1)
    carry_rows = carry_in + row_pre   # positives before each row, global (TR,1)
    cum_gt = crow + carry_rows        # global inclusive cumsum            (TR,K)

    # 1-based global positions from two small iotas (broadcast on use)
    base = (c * (TR * K)).astype(jnp.float32)
    r_off = base + lax.broadcasted_iota(jnp.float32, (TR, 1), 0) * float(K)
    k_pos = lax.broadcasted_iota(jnp.float32, (1, K), 1) + 1.0
    pos = r_off + k_pos                                                  # (TR,K)

    # union - intersection == pos  =>  jaccard = pos / union  (union >= 1)
    union = gts + pos - cum_gt
    jaccard = pos / union

    # first difference along the flat sorted order:
    #   in-row previous via a lane roll (XLU slot); the row-boundary previous
    #   value (jaccard of the previous row's last element) is recomputed
    #   analytically from the carry, so no sublane roll is needed.
    shifted = pltpu.roll(jaccard, shift=1, axis=1)
    denom = jnp.maximum(gts + r_off - carry_rows, 1.0)
    prev_last = jnp.where(r_off > 0.0, r_off / denom, 0.0)   # 0 for global elem 0
    lane0 = lax.broadcasted_iota(jnp.int32, (1, K), 1) == 0
    grad = jaccard - jnp.where(lane0, prev_last, shifted)

    # chunk contribution to loss = dot(relu(errors_sorted), grad); err = -neg
    acc_ref[0] = acc_ref[0] + jnp.sum(jnp.maximum(-neg, 0.0) * grad)
    carry_ref[0] = carry_in + jnp.sum(row_tot)

    @pl.when(c == nc - 1)
    def _():
        out_ref[0, 0] = acc_ref[0]


# ---------------------------------------------------------------------------
# Wrapper (equivalent to LovaszHingeLoss.forward, per_image=False, ignore=None)
# ---------------------------------------------------------------------------
def lovasz_hinge_loss(inputs, targets):
    P = inputs.size
    K = _K
    tr2 = min(_TR2, max(1, pl.cdiv(P, K)))      # kernel-2 chunk rows
    chunk = K * tr2
    n_chunks = pl.cdiv(P, chunk)
    P_pad = n_chunks * chunk                    # single pad, shared by both kernels

    x = inputs.reshape(-1).astype(jnp.float32)
    y = targets.reshape(-1).astype(jnp.float32)
    if P_pad != P:
        x = jnp.pad(x, (0, P_pad - P))
        y = jnp.pad(y, (0, P_pad - P))

    # ---- kernel 1: negated hinge errors + bf16 labels, tail masked ----------
    rtot = P_pad // 128
    tr1 = min(_TR1, rtot)
    x2 = x.reshape(rtot, 128)
    y2 = y.reshape(rtot, 128)
    neg2, lab2 = pl.pallas_call(
        functools.partial(_errors_kernel, n_valid=P, block_rows=tr1),
        out_shape=(jax.ShapeDtypeStruct((rtot, 128), jnp.float32),
                   jax.ShapeDtypeStruct((rtot, 128), jnp.bfloat16)),
        grid=(pl.cdiv(rtot, tr1),),
        in_specs=[pl.BlockSpec((tr1, 128), lambda i: (i, 0)),
                  pl.BlockSpec((tr1, 128), lambda i: (i, 0))],
        out_specs=(pl.BlockSpec((tr1, 128), lambda i: (i, 0)),
                   pl.BlockSpec((tr1, 128), lambda i: (i, 0))),
        compiler_params=pltpu.CompilerParams(
            dimension_semantics=("parallel",),
            vmem_limit_bytes=32 * 1024 * 1024),
    )(x2, y2)
    neg = neg2.reshape(-1)
    lab = lab2.reshape(-1)

    # total positive count (sort invariant) -> SMEM scalar input for kernel 2
    gts = jnp.sum(lab, dtype=jnp.float32).reshape(1)

    # descending sort of errors == ascending sort of negated errors; one
    # key-value lax.sort carries the bf16 labels along.
    # TODO(synk): no Pallas TPU sort primitive; ties may order differently than
    # torch.sort(descending=True) (loss value is unaffected).
    neg_sorted, gt_sorted = lax.sort((neg, lab), dimension=0,
                                     is_stable=True, num_keys=1)
    err2 = neg_sorted.reshape(n_chunks * tr2, K)
    gt2 = gt_sorted.reshape(n_chunks * tr2, K)

    # hoisted constants: inclusive upper-tri for the in-row cumsum matmul and
    # strict lower-tri for the within-chunk row prefix (0/1 -> exact in bf16)
    tri = (jnp.arange(K)[:, None] <= jnp.arange(K)[None, :]).astype(jnp.bfloat16)
    stri = (jnp.arange(tr2)[:, None] > jnp.arange(tr2)[None, :]).astype(jnp.bfloat16)

    # ---- kernel 2: gridded Lovasz-grad + relu-dot with SMEM running carry ---
    # TODO(synk): on v7x the chunk axis could be made 'parallel' by precomputing
    # per-chunk carries in XLA; kept sequential ('arbitrary') for the carry.
    loss = pl.pallas_call(
        _lovasz_kernel,
        out_shape=jax.ShapeDtypeStruct((1, 1), jnp.float32),
        grid=(n_chunks,),
        in_specs=[pl.BlockSpec(memory_space=pltpu.MemorySpace.SMEM),   # gts
                  pl.BlockSpec((tr2, K), lambda c: (c, 0)),            # neg_sorted
                  pl.BlockSpec((tr2, K), lambda c: (c, 0)),            # gt_sorted
                  pl.BlockSpec((K, K), lambda c: (0, 0)),              # tri (resident)
                  pl.BlockSpec((tr2, tr2), lambda c: (0, 0))],         # stri (resident)
        out_specs=pl.BlockSpec(memory_space=pltpu.MemorySpace.SMEM),
        scratch_shapes=[pltpu.SMEM((1,), jnp.float32),    # positive-count carry
                        pltpu.SMEM((1,), jnp.float32)],   # loss accumulator
        compiler_params=pltpu.CompilerParams(
            dimension_semantics=("arbitrary",)),
    )(gts, err2, gt2, tri, stri)
    return loss[0, 0]


# ---------------------------------------------------------------------------
# Pure-JAX reference (mirrors the PyTorch code) for a sanity check.
# ---------------------------------------------------------------------------
def _reference(inputs, targets):
    scores = jax.nn.sigmoid(inputs).reshape(-1).astype(jnp.float32)
    labels = targets.reshape(-1).astype(jnp.float32)
    signs = 2.0 * labels - 1.0
    errors = 1.0 - scores * signs
    perm = jnp.argsort(-errors)
    errors_sorted = errors[perm]
    gt_sorted = labels[perm]
    gts = gt_sorted.sum()
    intersection = gts - jnp.cumsum(gt_sorted)
    union = gts + jnp.cumsum(1.0 - gt_sorted)
    jaccard = 1.0 - intersection / union
    grad = jnp.concatenate([jaccard[:1], jaccard[1:] - jaccard[:-1]])
    return jnp.dot(jnp.maximum(errors_sorted, 0.0), grad)


if __name__ == "__main__":
    key = jax.random.PRNGKey(0)
    k1, k2 = jax.random.split(key)
    B, H, W = 2, 16, 16
    inputs = jax.random.normal(k1, (B, H, W), dtype=jnp.float32)
    targets = (jax.random.uniform(k2, (B, H, W)) > 0.5).astype(jnp.float32)

    out = jax.block_until_ready(lovasz_hinge_loss(inputs, targets))
    ref = jax.block_until_ready(_reference(inputs, targets))

    assert jnp.isfinite(out), "non-finite loss"
    assert jnp.allclose(out, ref, rtol=1e-3, atol=1e-4), (out, ref)
    print("KERNEL_OK")
</pallas_src>

<mosaic_0001>
module attributes {stable_mosaic.version = 11 : i64} {
  func.func @_errors_kernel(%arg0: i32, %arg1: memref<4x128xf32, #tpu.memory_space<vmem>>, %arg2: memref<4x128xf32, #tpu.memory_space<vmem>>, %arg3: memref<4x128xf32, #tpu.memory_space<vmem>>, %arg4: memref<4x128xbf16, #tpu.memory_space<vmem>>) attributes {dimension_semantics = [#tpu.dimension_semantics<parallel>], iteration_bounds = array<i64: 1>, scalar_prefetch = 0 : i64, scratch_operands = 0 : i64, tpu.core_type = #tpu.core_type<tc>, window_params = [{transform_indices = @transform_0, window_bounds = array<i64: 4, 128>}, {transform_indices = @transform_1, window_bounds = array<i64: 4, 128>}, {transform_indices = @transform_2, window_bounds = array<i64: 4, 128>}, {transform_indices = @transform_3, window_bounds = array<i64: 4, 128>}]} {
    %c0 = arith.constant 0 : index
    %c0_0 = arith.constant 0 : index
    %0 = vector.load %arg1[%c0, %c0_0] : memref<4x128xf32, #tpu.memory_space<vmem>>, vector<4x128xf32>
    %c0_1 = arith.constant 0 : index
    %c0_2 = arith.constant 0 : index
    %1 = vector.load %arg2[%c0_1, %c0_2] : memref<4x128xf32, #tpu.memory_space<vmem>>, vector<4x128xf32>
    %c512_i32 = arith.constant 512 : i32
    %2 = arith.muli %arg0, %c512_i32 : i32
    %3 = tpu.iota {dimensions = array<i32: 0>} : vector<4x128xi32>
    %4 = tpu.iota {dimensions = array<i32: 1>} : vector<4x128xi32>
    %c128_i32 = arith.constant 128 : i32
    %5 = vector.broadcast %c128_i32 : i32 to vector<4x128xi32>
    %6 = arith.muli %3, %5 : vector<4x128xi32>
    %7 = vector.broadcast %2 : i32 to vector<4x128xi32>
    %8 = arith.addi %7, %6 : vector<4x128xi32>
    %9 = arith.addi %8, %4 : vector<4x128xi32>
    %c512_i32_3 = arith.constant 512 : i32
    %10 = vector.broadcast %c512_i32_3 : i32 to vector<4x128xi32>
    %11 = arith.cmpi slt, %9, %10 : vector<4x128xi32>
    %cst = arith.constant 5.000000e-01 : f32
    %12 = vector.broadcast %cst : f32 to vector<4x128xf32>
    %13 = arith.mulf %12, %0 : vector<4x128xf32>
    %14 = math.tanh %13 : vector<4x128xf32>
    %cst_4 = arith.constant 5.000000e-01 : f32
    %15 = vector.broadcast %cst_4 : f32 to vector<4x128xf32>
    %16 = arith.mulf %15, %14 : vector<4x128xf32>
    %cst_5 = arith.constant 5.000000e-01 : f32
    %17 = vector.broadcast %cst_5 : f32 to vector<4x128xf32>
    %18 = arith.addf %16, %17 : vector<4x128xf32>
    %cst_6 = arith.constant 2.000000e+00 : f32
    %19 = vector.broadcast %cst_6 : f32 to vector<4x128xf32>
    %20 = arith.mulf %19, %1 : vector<4x128xf32>
    %cst_7 = arith.constant 1.000000e+00 : f32
    %21 = vector.broadcast %cst_7 : f32 to vector<4x128xf32>
    %22 = arith.subf %20, %21 : vector<4x128xf32>
    %23 = arith.mulf %18, %22 : vector<4x128xf32>
    %cst_8 = arith.constant 1.000000e+00 : f32
    %24 = vector.broadcast %cst_8 : f32 to vector<4x128xf32>
    %25 = arith.subf %23, %24 : vector<4x128xf32>
    %cst_9 = arith.constant 1.000000e+00 : f32
    %26 = vector.broadcast %cst_9 : f32 to vector<4x128xf32>
    %27 = arith.select %11, %25, %26 : vector<4x128xi1>, vector<4x128xf32>
    %c0_10 = arith.constant 0 : index
    %c0_11 = arith.constant 0 : index
    %28 = vector.load %arg3[%c0_10, %c0_11] : memref<4x128xf32, #tpu.memory_space<vmem>>, vector<4x128xf32>
    tpu.vector_store %arg3[%c0_10, %c0_11], %27 {strides = array<i32>} : memref<4x128xf32, #tpu.memory_space<vmem>>, vector<4x128xf32>,
    %cst_12 = arith.constant 0.000000e+00 : f32
    %29 = vector.broadcast %cst_12 : f32 to vector<4x128xf32>
    %30 = arith.select %11, %1, %29 : vector<4x128xi1>, vector<4x128xf32>
    %31 = arith.truncf %30 : vector<4x128xf32> to vector<4x128xbf16>
    %c0_13 = arith.constant 0 : index
    %c0_14 = arith.constant 0 : index
    %32 = vector.load %arg4[%c0_13, %c0_14] : memref<4x128xbf16, #tpu.memory_space<vmem>>, vector<4x128xbf16>
    tpu.vector_store %arg4[%c0_13, %c0_14], %31 {strides = array<i32>} : memref<4x128xbf16, #tpu.memory_space<vmem>>, vector<4x128xbf16>,
    return
  }
  func.func @transform_0(%arg0: i32) -> (i32, i32) {
    %c0_i32 = arith.constant 0 : i32
    %c0_i32_0 = arith.constant 0 : i32
    return %arg0, %c0_i32 : i32, i32
  }
  func.func @transform_1(%arg0: i32) -> (i32, i32) {
    %c0_i32 = arith.constant 0 : i32
    %c0_i32_0 = arith.constant 0 : i32
    return %arg0, %c0_i32 : i32, i32
  }
  func.func @transform_2(%arg0: i32) -> (i32, i32) {
    %c0_i32 = arith.constant 0 : i32
    %c0_i32_0 = arith.constant 0 : i32
    return %arg0, %c0_i32 : i32, i32
  }
  func.func @transform_3(%arg0: i32) -> (i32, i32) {
    %c0_i32 = arith.constant 0 : i32
    %c0_i32_0 = arith.constant 0 : i32
    return %arg0, %c0_i32 : i32, i32
  }
}

</mosaic_0001>

<llo_original>
// kernel: tpu_custom_call.1
$region0: #{tpu_custom_call.1}
  #allocation0 [shape = 'u32[]', space=smem, size = 0x4, offset = 0x4, fixed_abs, tag = 'smem constant byte address 0x4 - core index']
  #allocation1 [shape = 'u32[144,128]{1,0:T(1,128)}', space=vmem, size = 0x12000, scoped, tag = 'internal scratch']
  %s0 = inlined_call_operand.hbm [shape: f32[4,128], index: 0, kind: input, shape index: {}]
  %s1 = inlined_call_operand.hbm [shape: f32[4,128], index: 1, kind: input, shape index: {}]
  %s2 = inlined_call_operand.hbm [shape: f32[4,128], index: 2, kind: output, shape index: {0}]
  %s3 = inlined_call_operand.hbm [shape: bf16[4,128], index: 3, kind: output, shape index: {1}]
  %4 = xla_tuple %s2, %s3
  %s5 = sld [smem:[#allocation0]]
  $region34: #{tpu_custom_call.1} parent=0
    _
  %s7 = ssub.s32 1, %s5
  %s8 = scalar_select 0, %s7, %s5
  $region1: #{tpu_custom_call.1} parent=0
    #allocation2 [shape = 'u8[2048]{0}', space=vmem, size = 0x800, scoped, tag = 'input window, operand 0, single buffered']
    #allocation3 [shape = 's32[1]{0}', space=sflag, size = 0x4, scoped, tag = 'scoped memory for tpu_custom_call.1']
    #allocation4 [shape = 's32[1]{0}', space=sflag, size = 0x4, scoped, tag = 'scoped memory for tpu_custom_call.1']
    #allocation5 [shape = 'u8[2048]{0}', space=vmem, size = 0x800, scoped, tag = 'input window, operand 1, single buffered']
    #allocation6 [shape = 's32[1]{0}', space=sflag, size = 0x4, scoped, tag = 'scoped memory for tpu_custom_call.1']
    #allocation7 [shape = 'u8[2048]{0}', space=vmem, size = 0x800, scoped, tag = 'output window, operand 0, single buffered']
    #allocation8 [shape = 'u8[1024]{0}', space=vmem, size = 0x400, scoped, tag = 'output window, operand 1, single buffered']
    #allocation9 [shape = 's32[1]{0}', space=sflag, size = 0x4, scoped, tag = 'scoped memory for tpu_custom_call.1']
    %9 = vsyncpa [#allocation3], 0
    %10 = vsyncpa [#allocation6], 0
    %11 = vsyncpa [#allocation4], 0
    %12 = vsyncpa [#allocation9], 0
    // Predicated region
    $region2: #{tpu_custom_call.1} parent=1 // pred_check
      _
    $region3: #{tpu_custom_call.1} parent=1 // pred_check_branch
      %14 = sbr.rel (0) target = $region5
    $region4: #{tpu_custom_call.1} parent=1 // pred_region
      %s16 = ssub.s32 64, 64
      %17 = vsyncadd [#allocation3], %s16
      %s19 = sshll.u32 [#allocation2], 4
      %s20 = int_to_ptr.vmem [resolvable:$true] %s19
      %22 = dma.hbm_to_vmem [thread:$0]  %s0, 64, %s20, [#allocation3]
    $region5: #{tpu_custom_call.1} parent=1 // pred_fallthru
      _
    // Predicated region
    $region6: #{tpu_custom_call.1} parent=1 // pred_check
      _
    $region7: #{tpu_custom_call.1} parent=1 // pred_check_branch
      %24 = sbr.rel (0) target = $region9
    $region8: #{tpu_custom_call.1} parent=1 // pred_region
      %s26 = ssub.s32 64, 64
      %27 = vsyncadd [#allocation6], %s26
      %s29 = sshll.u32 [#allocation5], 4
      %s30 = int_to_ptr.vmem [resolvable:$true] %s29
      %32 = dma.hbm_to_vmem [thread:$0]  %s1, 64, %s30, [#allocation6]
    $region9: #{tpu_custom_call.1} parent=1 // pred_fallthru
      _
    // Predicated region
    $region10: #{tpu_custom_call.1} parent=1 // pred_check
      _
    $region11: #{tpu_custom_call.1} parent=1 // pred_check_branch
      %34 = sbr.rel (0) target = $region13
    $region12: #{tpu_custom_call.1} parent=1 // pred_region
      %35 = dma.done [#allocation3], 64
    $region13: #{tpu_custom_call.1} parent=1 // pred_fallthru
      _
    // Predicated region
    $region14: #{tpu_custom_call.1} parent=1 // pred_check
      _
    $region15: #{tpu_custom_call.1} parent=1 // pred_check_branch
      %37 = sbr.rel (0) target = $region17
    $region16: #{tpu_custom_call.1} parent=1 // pred_region
      %38 = dma.done [#allocation6], 64
    $region17: #{tpu_custom_call.1} parent=1 // pred_fallthru
      _
    %v39 = vld [vmem:[#allocation2] sm:$0xf]
    %v40 = vld [vmem:[#allocation5] sm:$0xf]
    %s41 = smul.u32 0, 512
    %v42 = vlaneseq
    %v43 = vshrl.u32 %v42, 7
    %v44 = vlaneseq
    %v45 = vand.u32 %v44, 127
    %v46 = vmul.u32 %v43, 128
    %v47 = vstv %s41
    %v48 = vadd.s32 %v47, %v46
    %v49 = vadd.s32 %v48, %v45
    %vm50 = vcmp.lt.s32.totalorder %v49, 512
    %v51 = vmul.f32 %v39, 0.5
    %v52 = vtanh.pop %v51
    %v53 = vmul.f32 %v52, 0.5
    %v54 = vadd.f32 %v53, 0.5
    %v55 = vmul.f32 %v40, 2.0
    %v56 = vsub.f32 %v55, 1.0
    %v57 = vmul.f32 %v54, %v56
    %v58 = vsub.f32 %v57, 1.0
    %v59 = vsel %vm50, %v58, 1.0
    %60 = vst [vmem:[#allocation7] sm:$0xf] %v59
    %v61 = vsel %vm50, %v40, 0.0
    %v62 = vpack.c.bf16 %v61, %v61
    %63 = vst [vmem:[#allocation8] sm:$0x3] %v62
    // Predicated region
    $region18: #{tpu_custom_call.1} parent=1 // pred_check
      _
    $region19: #{tpu_custom_call.1} parent=1 // pred_check_branch
      %65 = sbr.rel (0) target = $region21
    $region20: #{tpu_custom_call.1} parent=1 // pred_region
      %s67 = ssub.s32 64, 64
      %68 = vsyncadd [#allocation4], %s67
      %s70 = sshll.u32 [#allocation7], 4
      %s71 = int_to_ptr.vmem [resolvable:$true] %s70
      %73 = dma.vmem_to_hbm [thread:$0]  %s71, 64, %s2, [#allocation4]
    $region21: #{tpu_custom_call.1} parent=1 // pred_fallthru
      _
    // Predicated region
    $region22: #{tpu_custom_call.1} parent=1 // pred_check
      _
    $region23: #{tpu_custom_call.1} parent=1 // pred_check_branch
      %75 = sbr.rel (0) target = $region25
    $region24: #{tpu_custom_call.1} parent=1 // pred_region
      %s77 = ssub.s32 32, 32
      %78 = vsyncadd [#allocation9], %s77
      %s80 = sshll.u32 [#allocation8], 4
      %s81 = int_to_ptr.vmem [resolvable:$true] %s80
      %83 = dma.vmem_to_hbm [thread:$0]  %s81, 32, %s3, [#allocation9]
    $region25: #{tpu_custom_call.1} parent=1 // pred_fallthru
      _
    // Predicated region
    $region26: #{tpu_custom_call.1} parent=1 // pred_check
      _
    $region27: #{tpu_custom_call.1} parent=1 // pred_check_branch
      %85 = sbr.rel (0) target = $region29
    $region28: #{tpu_custom_call.1} parent=1 // pred_region
      %86 = dma.done [#allocation4], 64
    $region29: #{tpu_custom_call.1} parent=1 // pred_fallthru
      _
    // Predicated region
    $region30: #{tpu_custom_call.1} parent=1 // pred_check
      _
    $region31: #{tpu_custom_call.1} parent=1 // pred_check_branch
      %88 = sbr.rel (0) target = $region33
    $region32: #{tpu_custom_call.1} parent=1 // pred_region
      %89 = dma.done [#allocation9], 32
    $region33: #{tpu_custom_call.1} parent=1 // pred_fallthru
      _
    %90 = vsyncpa [#allocation3], 1
    %91 = vsyncpa [#allocation6], 1
    %92 = vsyncpa [#allocation4], 1
    %93 = vsyncpa [#allocation9], 1

</llo_original>
